<compile_context>
chip_gen: v6e
topology: v6e:2x2x1
jax: 0.10.0
libtpu: 0.0.40
codegen_flags: <defaults>
</compile_context>

<pallas_src>
import functools

import jax
import jax.numpy as jnp
from jax.experimental import pallas as pl
from jax.experimental.pallas import tpu as pltpu


def _default_num_slices():
    """2 slices only where there are 2 TensorCores per chip; else 1."""
    try:
        kind = jax.devices()[0].device_kind.lower()
    except Exception:
        return 1
    if "v7" in kind or "7x" in kind:
        return 2                       # v7x: 2 TensorCores per chip
    if "v4" in kind:
        return 2                       # megacore
    if "v5" in kind and "lite" not in kind and "v5e" not in kind:
        return 2                       # v5p megacore
    return 1                           # single-TC: v2/v3/v5e/v6e


def _hinge_sum_kernel(m_ref, o_ref, acc_ref, *, calibration, n_rows, tile_rows,
                      lane, nblocks, steps_per_slice, num_slices, fold_sublanes):
    """Per-slice partial sum of max(calibration - m, 0) over the (n_rows, lane) slab."""
    c = pl.program_id(0)               # "parallel" slice (a TensorCore where there are 2)
    i = pl.program_id(1)               # sequential step within the slice
    b = c * steps_per_slice + i        # logical block index over the slab

    @pl.when(i == 0)
    def _():
        acc_ref[...] = jnp.zeros_like(acc_ref)

    m = m_ref[...]
    calib = jnp.asarray(calibration, dtype=m.dtype)
    hinge = jnp.maximum(calib - m, 0).astype(jnp.float32)

    if fold_sublanes:
        # Pure-VALU fold: (tile_rows, 128) -> (tile_rows//8, 8, 128); summing
        # axis 0 is vreg-wise adds into a single (8, 128) vreg tile.  No XLU.
        def fold(h):
            return h.reshape(tile_rows // 8, 8, lane).sum(axis=0)
    else:
        # Single-block small-input case (tile_rows == n_rows, not a multiple of
        # 8): one cheap cross-sublane reduce, executed exactly once.
        def fold(h):
            return jnp.sum(h, axis=0, keepdims=True)

    has_ragged = (n_rows % tile_rows) != 0                  # last block overhangs the slab
    has_redundant = num_slices * steps_per_slice > nblocks  # clamped re-read blocks exist

    if not (has_ragged or has_redundant):
        acc_ref[...] += fold(hinge)                         # hot path: no guards at all
    else:
        row_end = (b + 1) * tile_rows
        is_full = jnp.logical_and(b < nblocks, row_end <= n_rows)

        @pl.when(is_full)
        def _():
            acc_ref[...] += fold(hinge)

        if has_ragged:
            is_ragged = jnp.logical_and(b < nblocks, row_end > n_rows)

            @pl.when(is_ragged)                             # cold path: at most one block
            def _():
                row = jax.lax.broadcasted_iota(jnp.int32, (tile_rows, lane), 0)
                valid = (b * tile_rows + row) < n_rows
                acc_ref[...] += fold(jnp.where(valid, hinge, 0.0))

    @pl.when(i == pl.num_programs(1) - 1)
    def _():
        # Single cross-lane / cross-sublane reduction, once per slice.
        o_ref[...] = jnp.sum(acc_ref[...], keepdims=True)


def hinge_loss(margins, calibration, *, max_tile_rows=8192, num_slices=None):
    """Pallas implementation of HingeLoss.forward.

    margins: arbitrary-shaped float array.
    calibration: python float (the module's constructor argument).
    Returns a scalar in the input dtype (torch .mean() semantics; accumulation
    is done in f32).
    """
    orig_dtype = margins.dtype
    calibration = float(calibration)
    total = int(margins.size)
    if total == 0:
        # torch's mean of an empty tensor is nan.
        return jnp.full((), jnp.nan, dtype=orig_dtype)

    lane = 128
    flat = margins.reshape(-1)
    n_rows = total // lane
    tail_len = total - n_rows * lane

    # Sub-128-element tail: fold in with plain jnp (tiny; avoids any zero-pad
    # or full-slab copy of the input).
    if tail_len:
        tail = flat[n_rows * lane:]
        tail_sum = jnp.sum(
            jnp.maximum(jnp.asarray(calibration, dtype=flat.dtype) - tail, 0
                        ).astype(jnp.float32))
    else:
        tail_sum = jnp.float32(0.0)

    if n_rows == 0:
        # Fewer than one lane of elements: nothing for the kernel to do.
        return (tail_sum / total).astype(orig_dtype)

    # Lane-aligned prefix as a (n_rows, 128) slab.  When total % 128 == 0 this
    # is a pure reshape (no copy).
    # TODO(synk): for very large non-lane-aligned inputs the prefix slice may
    # still materialize a copy; a 1-D manual-DMA kernel would remove it.
    if tail_len:
        m2d = flat[:n_rows * lane].reshape(n_rows, lane)
    else:
        m2d = flat.reshape(n_rows, lane)

    itemsize = jnp.dtype(orig_dtype).itemsize
    pack = {4: 8, 2: 16, 1: 32}.get(itemsize, 8)   # sublane packing per dtype

    # Block sizing: as large as possible (amortize per-step overhead, reach the
    # HBM-roofline plateau) while respecting the packed sublane constraint.
    if n_rows <= max_tile_rows:
        tile_rows = n_rows                          # single block == full row extent
    else:
        tile_rows = max(pack, (max_tile_rows // pack) * pack)

    nblocks = pl.cdiv(n_rows, tile_rows)
    fold_sublanes = (tile_rows % 8) == 0
    acc_rows = 8 if fold_sublanes else 1

    if num_slices is None:
        num_slices = _default_num_slices()
    num_slices = max(1, min(int(num_slices), nblocks))
    steps_per_slice = pl.cdiv(nblocks, num_slices)

    def in_index_map(c, i):
        b = c * steps_per_slice + i
        # Clamp so steps past the end re-read the last block; those logical
        # positions are skipped in-kernel, so they contribute exactly 0.
        return (jnp.minimum(b, nblocks - 1), 0)

    kernel = functools.partial(
        _hinge_sum_kernel,
        calibration=calibration,
        n_rows=n_rows,
        tile_rows=tile_rows,
        lane=lane,
        nblocks=nblocks,
        steps_per_slice=steps_per_slice,
        num_slices=num_slices,
        fold_sublanes=fold_sublanes,
    )

    cost = pl.CostEstimate(
        flops=2 * total,
        transcendentals=0,
        bytes_accessed=n_rows * lane * itemsize + num_slices * 4,
    )

    partials = pl.pallas_call(
        kernel,
        out_shape=jax.ShapeDtypeStruct((num_slices, 1), jnp.float32),
        grid=(num_slices, steps_per_slice),
        in_specs=[pl.BlockSpec((tile_rows, lane), in_index_map)],
        out_specs=pl.BlockSpec((1, 1), lambda c, i: (c, 0)),
        scratch_shapes=[pltpu.VMEM((acc_rows, lane), jnp.float32)],
        compiler_params=pltpu.CompilerParams(
            dimension_semantics=("parallel", "arbitrary"),
        ),
        cost_estimate=cost,
    )(m2d)

    return ((jnp.sum(partials) + tail_sum) / total).astype(orig_dtype)


if __name__ == "__main__":
    key = jax.random.PRNGKey(0)
    # "margins" as produced by a robustness-certification pipeline: one margin
    # per (example, class) pair — small synthetic shape.
    margins = jax.random.normal(key, (2, 4, 16, 16), dtype=jnp.float32)
    calibration = 0.5

    loss = hinge_loss(margins, calibration)
    loss = jax.block_until_ready(loss)

    # Reference check in plain JAX (mirrors torch semantics exactly).
    ref = jnp.mean(jnp.maximum(calibration - margins, 0.0))
    assert jnp.allclose(loss, ref, rtol=1e-5, atol=1e-6), (loss, ref)

    # Also exercise the multi-block / ragged-last-block / slice-split paths by
    # forcing a tiny tile.
    m2 = jax.random.normal(jax.random.PRNGKey(1), (40, 128), dtype=jnp.float32)
    loss2 = jax.block_until_ready(hinge_loss(m2, 0.25, max_tile_rows=16))
    ref2 = jnp.mean(jnp.maximum(0.25 - m2, 0.0))
    assert jnp.allclose(loss2, ref2, rtol=1e-5, atol=1e-6), (loss2, ref2)

    print("KERNEL_OK")
</pallas_src>

<mosaic_0001>
module attributes {stable_mosaic.version = 11 : i64} {
  func.func @_hinge_sum_kernel(%arg0: i32, %arg1: i32, %arg2: memref<16x128xf32, #tpu.memory_space<vmem>>, %arg3: memref<1x1xf32, #tpu.memory_space<vmem>>, %arg4: memref<8x128xf32, #tpu.memory_space<vmem>>) attributes {dimension_semantics = [#tpu.dimension_semantics<parallel>, #tpu.dimension_semantics<arbitrary>], iteration_bounds = array<i64: 1, 1>, scalar_prefetch = 0 : i64, scratch_operands = 1 : i64, tpu.core_type = #tpu.core_type<tc>, window_params = [{transform_indices = @transform_0, window_bounds = array<i64: 16, 128>}, {transform_indices = @transform_1, window_bounds = array<i64: 1, 1>}]} {
    %c0_i32 = arith.constant 0 : i32
    %0 = arith.cmpi eq, %arg1, %c0_i32 : i32
    %1 = arith.extui %0 : i1 to i32
    %c0_i32_0 = arith.constant 0 : i32
    %2 = arith.cmpi ne, %1, %c0_i32_0 : i32
    scf.if %2 {
      %cst_10 = arith.constant 0.000000e+00 : f32
      %16 = vector.broadcast %cst_10 : f32 to vector<8x128xf32>
      %c0_11 = arith.constant 0 : index
      %c0_12 = arith.constant 0 : index
      %17 = vector.load %arg4[%c0_11, %c0_12] : memref<8x128xf32, #tpu.memory_space<vmem>>, vector<8x128xf32>
      tpu.vector_store %arg4[%c0_11, %c0_12], %16 {strides = array<i32>} : memref<8x128xf32, #tpu.memory_space<vmem>>, vector<8x128xf32>,
    } else {
    }
    %c0 = arith.constant 0 : index
    %c0_1 = arith.constant 0 : index
    %3 = vector.load %arg2[%c0, %c0_1] : memref<16x128xf32, #tpu.memory_space<vmem>>, vector<16x128xf32>
    %cst = arith.constant 5.000000e-01 : f32
    %4 = vector.broadcast %cst : f32 to vector<16x128xf32>
    %5 = arith.subf %4, %3 : vector<16x128xf32>
    %cst_2 = arith.constant 0.000000e+00 : f32
    %6 = vector.broadcast %cst_2 : f32 to vector<16x128xf32>
    %7 = arith.maximumf %5, %6 : vector<16x128xf32>
    %c0_3 = arith.constant 0 : index
    %c0_4 = arith.constant 0 : index
    %8 = vector.load %arg4[%c0_3, %c0_4] : memref<8x128xf32, #tpu.memory_space<vmem>>, vector<8x128xf32>
    %9 = vector.shape_cast %7 : vector<16x128xf32> to vector<2x8x128xf32>
    %cst_5 = arith.constant dense<0.000000e+00> : vector<8x128xf32>
    %10 = vector.multi_reduction <add>, %9, %cst_5 [0] : vector<2x8x128xf32> to vector<8x128xf32>
    %11 = arith.addf %8, %10 : vector<8x128xf32>
    %c0_6 = arith.constant 0 : index
    %c0_7 = arith.constant 0 : index
    %12 = vector.load %arg4[%c0_6, %c0_7] : memref<8x128xf32, #tpu.memory_space<vmem>>, vector<8x128xf32>
    tpu.vector_store %arg4[%c0_6, %c0_7], %11 {strides = array<i32>} : memref<8x128xf32, #tpu.memory_space<vmem>>, vector<8x128xf32>,
    %c0_i32_8 = arith.constant 0 : i32
    %13 = arith.cmpi eq, %arg1, %c0_i32_8 : i32
    %14 = arith.extui %13 : i1 to i32
    %c0_i32_9 = arith.constant 0 : i32
    %15 = arith.cmpi ne, %14, %c0_i32_9 : i32
    scf.if %15 {
      %c0_10 = arith.constant 0 : index
      %c0_11 = arith.constant 0 : index
      %16 = vector.load %arg4[%c0_10, %c0_11] : memref<8x128xf32, #tpu.memory_space<vmem>>, vector<8x128xf32>
      %17 = vector.shape_cast %16 : vector<8x128xf32> to vector<1x8x128xf32>
      %cst_12 = arith.constant dense<0.000000e+00> : vector<1xf32>
      %18 = vector.multi_reduction <add>, %17, %cst_12 [1, 2] : vector<1x8x128xf32> to vector<1xf32>
      %19 = vector.shape_cast %18 : vector<1xf32> to vector<1x1x1xf32>
      %20 = vector.extract %19[0, 0, 0] : f32 from vector<1x1x1xf32>
      %21 = vector.broadcast %20 : f32 to vector<1x1xf32>
      %c0_13 = arith.constant 0 : index
      %c0_14 = arith.constant 0 : index
      %22 = vector.load %arg3[%c0_13, %c0_14] : memref<1x1xf32, #tpu.memory_space<vmem>>, vector<1x1xf32>
      tpu.vector_store %arg3[%c0_13, %c0_14], %21 {strides = array<i32>} : memref<1x1xf32, #tpu.memory_space<vmem>>, vector<1x1xf32>,
    } else {
    }
    return
  }
  func.func @transform_0(%arg0: i32, %arg1: i32) -> (i32, i32) {
    %c1_i32 = arith.constant 1 : i32
    %0 = arith.muli %arg0, %c1_i32 : i32
    %1 = arith.addi %0, %arg1 : i32
    %c0_i32 = arith.constant 0 : i32
    %2 = arith.minsi %1, %c0_i32 : i32
    %c0_i32_0 = arith.constant 0 : i32
    %c0_i32_1 = arith.constant 0 : i32
    return %2, %c0_i32_0 : i32, i32
  }
  func.func @transform_1(%arg0: i32, %arg1: i32) -> (i32, i32) {
    %c0_i32 = arith.constant 0 : i32
    %c0_i32_0 = arith.constant 0 : i32
    return %arg0, %c0_i32 : i32, i32
  }
}

</mosaic_0001>

<llo_original>
// kernel: tpu_custom_call.1
$region0: #{tpu_custom_call.1}
  #allocation0 [shape = 'u32[]', space=smem, size = 0x4, offset = 0x4, fixed_abs, tag = 'smem constant byte address 0x4 - core index']
  #allocation1 [shape = 'u32[144,128]{1,0:T(1,128)}', space=vmem, size = 0x12000, scoped, tag = 'internal scratch']
  #allocation2 [shape = 'f32[8,128]{1,0:T(8,128)}', space=vmem, size = 0x1000, scoped, tag = 'scratch operand']
  %s0 = inlined_call_operand.hbm [shape: f32[16,128], index: 0, kind: input, shape index: {}]
  %s1 = inlined_call_operand.hbm [shape: f32[1,1], index: 1, kind: output, shape index: {}]
  %s2 = sld [smem:[#allocation0]]
  $region26: #{tpu_custom_call.1} parent=0
    _
  %s4 = ssub.s32 1, %s2
  %s5 = scalar_select 0, %s4, %s2
  $region1: #{tpu_custom_call.1} parent=0
    #allocation3 [shape = 'u8[8192]{0}', space=vmem, size = 0x2000, scoped, tag = 'input window, operand 0, single buffered']
    #allocation4 [shape = 's32[1]{0}', space=sflag, size = 0x4, scoped, tag = 'scoped memory for tpu_custom_call.1']
    #allocation5 [shape = 's32[1]{0}', space=sflag, size = 0x4, scoped, tag = 'scoped memory for tpu_custom_call.1']
    #allocation6 [shape = 'u8[512]{0}', space=vmem, size = 0x400, scoped, tag = 'output window, operand 0, single buffered']
    %6 = vsyncpa [#allocation4], 0
    %7 = vsyncpa [#allocation5], 0
    // Predicated region
    $region2: #{tpu_custom_call.1} parent=1 // pred_check
      _
    $region3: #{tpu_custom_call.1} parent=1 // pred_check_branch
      %9 = sbr.rel (0) target = $region5
    $region4: #{tpu_custom_call.1} parent=1 // pred_region
      %s10 = sadd.s32 0, 0
      %p11 = scmp.lt.s32.totalorder %s10, 0
      %s12 = scalar_select %p11, %s10, 0
      %s13 = smul.u32 2, %s12
      %s15 = ssub.s32 256, 256
      %16 = vsyncadd [#allocation4], %s15
      %s17 = smul.addr %s13, 128
      %s18 = scalar_lea.hbm %s0, %s17
      %s19 = sshll.u32 [#allocation3], 4
      %s20 = int_to_ptr.vmem [resolvable:$true] %s19
      %25 = dma.hbm_to_vmem [thread:$0]  %s18, 256, %s20, [#allocation4], 128, 128, 8
    $region5: #{tpu_custom_call.1} parent=1 // pred_fallthru
      _
    // Predicated region
    $region6: #{tpu_custom_call.1} parent=1 // pred_check
      _
    $region7: #{tpu_custom_call.1} parent=1 // pred_check_branch
      %27 = sbr.rel (0) target = $region9
    $region8: #{tpu_custom_call.1} parent=1 // pred_region
      %28 = dma.done [#allocation4], 256
    $region9: #{tpu_custom_call.1} parent=1 // pred_fallthru
      _
    %s29 = sadd.s32 0, 0
    %p30 = scmp.lt.s32.totalorder %s29, 0
    %s31 = scalar_select %p30, %s29, 0
    %s32 = smul.u32 2, %s31
    %p33 = scmp.eq.s32.totalorder 0, 0
    // Predicated region
    $region10: #{tpu_custom_call.1} parent=1 // pred_check
      %p34 = pneg %p33
    $region11: #{tpu_custom_call.1} parent=1 // pred_check_branch
      %36 = sbr.rel (%p34) target = $region13
    $region12: #{tpu_custom_call.1} parent=1 // pred_region
      %37 = vst [vmem:[#allocation2] sm:$0xff] 0.0
    $region13: #{tpu_custom_call.1} parent=1 // pred_fallthru
      _
    %v38 = vld [vmem:[#allocation3] sm:$0xff]
    %v39 = vld [vmem:[#allocation3 + $0x8] sm:$0xff]
    %v40 = vsub.f32 0.5, %v38
    %v41 = vsub.f32 0.5, %v39
    %v42 = vmax.f32 %v40, 0.0
    %v43 = vmax.f32 %v41, 0.0
    %v44 = vld [vmem:[#allocation2] sm:$0xff]
    %v45 = vadd.f32 %v42, %v43
    %v46 = vadd.f32 %v44, %v45
    %47 = vst [vmem:[#allocation2] sm:$0xff] %v46
    // Predicated region
    $region14: #{tpu_custom_call.1} parent=1 // pred_check
      %p48 = pneg %p33
    $region15: #{tpu_custom_call.1} parent=1 // pred_check_branch
      %50 = sbr.rel (%p48) target = $region17
    $region16: #{tpu_custom_call.1} parent=1 // pred_region
      %v51 = vld [vmem:[#allocation2] sm:$0xff]
      %52 = vadd.xlane.f32.xlu0 %v51
      %v53 = vpop.xlane.xlu0 %52
      %v54 = vrot.slane %v53, 4
      %v55 = vadd.f32 %v53, %v54
      %v56 = vrot.slane %v55, 2
      %v57 = vadd.f32 %v55, %v56
      %v58 = vrot.slane %v57, 1
      %v59 = vadd.f32 %v57, %v58
      %s60 = vtos %v59
      %v61 = vstv %s60
      %vm62 = vcmask 0
      %63 = vst.msk [vmem:[#allocation6] sm:$0x1] %vm62, %v61
    $region17: #{tpu_custom_call.1} parent=1 // pred_fallthru
      _
    // Predicated region
    $region18: #{tpu_custom_call.1} parent=1 // pred_check
      _
    $region19: #{tpu_custom_call.1} parent=1 // pred_check_branch
      %65 = sbr.rel (0) target = $region21
    $region20: #{tpu_custom_call.1} parent=1 // pred_region
      %s67 = ssub.s32 16, 16
      %68 = vsyncadd [#allocation5], %s67
      %s70 = sshll.u32 [#allocation6], 4
      %s71 = int_to_ptr.vmem [resolvable:$true] %s70
      %73 = dma.vmem_to_hbm [thread:$0]  %s71, 16, %s1, [#allocation5]
    $region21: #{tpu_custom_call.1} parent=1 // pred_fallthru
      _
    // Predicated region
    $region22: #{tpu_custom_call.1} parent=1 // pred_check
      _
    $region23: #{tpu_custom_call.1} parent=1 // pred_check_branch
      %75 = sbr.rel (0) target = $region25
    $region24: #{tpu_custom_call.1} parent=1 // pred_region
      %76 = dma.done [#allocation5], 16
    $region25: #{tpu_custom_call.1} parent=1 // pred_fallthru
      _
    %77 = vsyncpa [#allocation4], 1
    %78 = vsyncpa [#allocation5], 1

</llo_original>
